<compile_context>
chip_gen: v6e
topology: v6e:2x2x1
jax: 0.10.0
libtpu: 0.0.40
codegen_flags: <defaults>
</compile_context>

<pallas_src>
import jax
import jax.numpy as jnp
from jax.experimental import pallas as pl
from jax.experimental.pallas import tpu as pltpu


def _round_up(n, m):
    return ((n + m - 1) // m) * m


def mlp_kernel(x_ref, w1_ref, b1_ref, w2_ref, b2_ref, w3_ref, b3_ref, o_ref):
    # Whole forward pass fused: 3 MXU matmuls + 2 ReLUs on one batch tile.
    x = x_ref[...]                                                    # [tile, in]
    h1 = jnp.dot(x, w1_ref[...], preferred_element_type=jnp.float32)
    h1 = jnp.maximum(h1 + b1_ref[...], 0.0)                           # [tile, 32]
    h2 = jnp.dot(h1, w2_ref[...], preferred_element_type=jnp.float32)
    h2 = jnp.maximum(h2 + b2_ref[...], 0.0)                           # [tile, 16]
    out = jnp.dot(h2, w3_ref[...], preferred_element_type=jnp.float32)
    o_ref[...] = (out + b3_ref[...]).astype(o_ref.dtype)              # [tile, out]


def feedforward_nn(x, params, *, max_tile=65536):
    """Pallas implementation of FeedforwardNN.forward.

    x: [B, input_dim] float32
    params (PyTorch nn.Linear layout):
      w1 [32, in], b1 [32], w2 [16, 32], b2 [16], w3 [out, 16], b3 [out]
    Returns [B, output_dim] float32.
    """
    w1, b1, w2, b2, w3, b3 = (params["w1"], params["b1"], params["w2"],
                              params["b2"], params["w3"], params["b3"])
    B, input_dim = x.shape
    h1_dim, h2_dim, output_dim = w1.shape[0], w2.shape[0], w3.shape[0]

    # Tiny, HBM-negligible layout plumbing on the weights only (never on x/out):
    # pre-transpose so the kernel computes x @ W^T as x_blk @ wT.
    w1t = w1.T                       # [in, 32]
    w2t = w2.T                       # [32, 16]
    w3t = w3.T                       # [16, out]
    b1r = b1.reshape(1, h1_dim)
    b2r = b2.reshape(1, h2_dim)
    b3r = b3.reshape(1, output_dim)

    # ---- Batch tiling -------------------------------------------------------
    lane = 128
    b_ceil = _round_up(B, lane)
    # >=2 grid steps when the batch allows it (keeps both v7x TensorCores busy),
    # and tile capped at max_tile rows so VMEM stays well inside the limit below.
    min_tiles = 2 if b_ceil >= 2 * lane else 1
    num_tiles = max(min_tiles, pl.cdiv(b_ceil, max_tile))
    tile = _round_up(pl.cdiv(b_ceil, num_tiles), lane)
    b_pad = num_tiles * tile

    # Pad the batch only when it is not already tile-aligned (padded rows
    # compute relu(bias) garbage and are sliced off below).
    if b_pad != B:
        x = jnp.pad(x, ((0, b_pad - B), (0, 0)))

    # Weights/biases: constant block index -> fetched once, resident in VMEM.
    resident = lambda r, c: pl.BlockSpec((r, c), lambda i: (0, 0))

    flops = 2 * b_pad * (input_dim * h1_dim + h1_dim * h2_dim + h2_dim * output_dim)
    w_bytes = 4 * int(w1.size + b1.size + w2.size + b2.size + w3.size + b3.size)
    cost = pl.CostEstimate(
        flops=flops,
        transcendentals=0,
        bytes_accessed=4 * b_pad * (input_dim + output_dim) + w_bytes,
    )

    out_padded = pl.pallas_call(
        mlp_kernel,
        out_shape=jax.ShapeDtypeStruct((b_pad, output_dim), jnp.float32),
        grid_spec=pl.GridSpec(
            grid=(num_tiles,),
            in_specs=[
                pl.BlockSpec((tile, input_dim), lambda i: (i, 0)),     # x tile
                resident(input_dim, h1_dim), resident(1, h1_dim),      # W1^T, b1
                resident(h1_dim, h2_dim),    resident(1, h2_dim),      # W2^T, b2
                resident(h2_dim, output_dim), resident(1, output_dim), # W3^T, b3
            ],
            out_specs=pl.BlockSpec((tile, output_dim), lambda i: (i, 0)),
        ),
        compiler_params=pltpu.CompilerParams(
            dimension_semantics=("parallel",),       # batch axis shards across TCs
            vmem_limit_bytes=48 * 1024 * 1024,       # big tiles need > default scoped VMEM
        ),
        cost_estimate=cost,
    )(x, w1t, b1r, w2t, b2r, w3t, b3r)

    return out_padded[:B]                                              # [B, out]


def init_params(key, input_dim, output_dim):
    """Deterministic synthetic init matching nn.Linear layouts ([out, in] weights, [out] biases)."""
    k1, k2, k3, k4, k5, k6 = jax.random.split(key, 6)
    scale = 0.1
    return {
        "w1": scale * jax.random.normal(k1, (32, input_dim), jnp.float32),
        "b1": scale * jax.random.normal(k2, (32,), jnp.float32),
        "w2": scale * jax.random.normal(k3, (16, 32), jnp.float32),
        "b2": scale * jax.random.normal(k4, (16,), jnp.float32),
        "w3": scale * jax.random.normal(k5, (output_dim, 16), jnp.float32),
        "b3": scale * jax.random.normal(k6, (output_dim,), jnp.float32),
    }


def reference_forward(x, p):
    h1 = jnp.maximum(x @ p["w1"].T + p["b1"][None, :], 0.0)
    h2 = jnp.maximum(h1 @ p["w2"].T + p["b2"][None, :], 0.0)
    return h2 @ p["w3"].T + p["b3"][None, :]


if __name__ == "__main__":
    key = jax.random.PRNGKey(0)
    kx1, kx2, kp = jax.random.split(key, 3)

    input_dim, output_dim = 8, 4
    params = init_params(kp, input_dim, output_dim)

    # Check 1: small non-aligned batch -> exercises the padded, 2-step grid path.
    x1 = jax.random.normal(kx1, (200, input_dim), jnp.float32)
    out1 = jax.block_until_ready(feedforward_nn(x1, params))
    ref1 = reference_forward(x1, params)
    assert out1.shape == (200, output_dim)
    assert jnp.allclose(out1, ref1, atol=1e-5, rtol=1e-5), "mismatch vs reference (B=200)"

    # Check 2: tile-aligned batch -> exercises the no-pad, 2-step grid path.
    x2 = jax.random.normal(kx2, (1024, input_dim), jnp.float32)
    out2 = jax.block_until_ready(feedforward_nn(x2, params))
    ref2 = reference_forward(x2, params)
    assert out2.shape == (1024, output_dim)
    assert jnp.allclose(out2, ref2, atol=1e-5, rtol=1e-5), "mismatch vs reference (B=1024)"

    print("KERNEL_OK")
</pallas_src>

<mosaic_0001>
module attributes {stable_mosaic.version = 11 : i64} {
  func.func @mlp_kernel(%arg0: i32, %arg1: memref<128x8xf32, #tpu.memory_space<vmem>>, %arg2: memref<8x32xf32, #tpu.memory_space<vmem>>, %arg3: memref<1x32xf32, #tpu.memory_space<vmem>>, %arg4: memref<32x16xf32, #tpu.memory_space<vmem>>, %arg5: memref<1x16xf32, #tpu.memory_space<vmem>>, %arg6: memref<16x4xf32, #tpu.memory_space<vmem>>, %arg7: memref<1x4xf32, #tpu.memory_space<vmem>>, %arg8: memref<128x4xf32, #tpu.memory_space<vmem>>) attributes {dimension_semantics = [#tpu.dimension_semantics<parallel>], iteration_bounds = array<i64: 2>, scalar_prefetch = 0 : i64, scratch_operands = 0 : i64, tpu.core_type = #tpu.core_type<tc>, window_params = [{transform_indices = @transform_0, window_bounds = array<i64: 128, 8>}, {pipeline_mode = #tpu.pipeline_mode<synchronous>, transform_indices = @transform_1, window_bounds = array<i64: 8, 32>}, {pipeline_mode = #tpu.pipeline_mode<synchronous>, transform_indices = @transform_2, window_bounds = array<i64: 1, 32>}, {pipeline_mode = #tpu.pipeline_mode<synchronous>, transform_indices = @transform_3, window_bounds = array<i64: 32, 16>}, {pipeline_mode = #tpu.pipeline_mode<synchronous>, transform_indices = @transform_4, window_bounds = array<i64: 1, 16>}, {pipeline_mode = #tpu.pipeline_mode<synchronous>, transform_indices = @transform_5, window_bounds = array<i64: 16, 4>}, {pipeline_mode = #tpu.pipeline_mode<synchronous>, transform_indices = @transform_6, window_bounds = array<i64: 1, 4>}, {transform_indices = @transform_7, window_bounds = array<i64: 128, 4>}]} {
    %c0 = arith.constant 0 : index
    %c0_0 = arith.constant 0 : index
    %0 = vector.load %arg1[%c0, %c0_0] : memref<128x8xf32, #tpu.memory_space<vmem>>, vector<128x8xf32>
    %c0_1 = arith.constant 0 : index
    %c0_2 = arith.constant 0 : index
    %1 = vector.load %arg2[%c0_1, %c0_2] : memref<8x32xf32, #tpu.memory_space<vmem>>, vector<8x32xf32>
    %cst = arith.constant dense<0.000000e+00> : vector<128x32xf32>
    %2 = tpu.matmul %0, %1, %cst {dimension_numbers = #tpu.dot_dimension_numbers<[1], [0], [0], [1], [0, 0, 1, 1], [], []>} : vector<128x8xf32>, vector<8x32xf32>, vector<128x32xf32> -> vector<128x32xf32>
    %c0_3 = arith.constant 0 : index
    %c0_4 = arith.constant 0 : index
    %3 = vector.load %arg3[%c0_3, %c0_4] : memref<1x32xf32, #tpu.memory_space<vmem>>, vector<1x32xf32>
    %4 = vector.broadcast %3 : vector<1x32xf32> to vector<128x32xf32>
    %5 = arith.addf %2, %4 : vector<128x32xf32>
    %cst_5 = arith.constant 0.000000e+00 : f32
    %6 = vector.broadcast %cst_5 : f32 to vector<128x32xf32>
    %7 = arith.maximumf %5, %6 : vector<128x32xf32>
    %c0_6 = arith.constant 0 : index
    %c0_7 = arith.constant 0 : index
    %8 = vector.load %arg4[%c0_6, %c0_7] : memref<32x16xf32, #tpu.memory_space<vmem>>, vector<32x16xf32>
    %cst_8 = arith.constant dense<0.000000e+00> : vector<128x16xf32>
    %9 = tpu.matmul %7, %8, %cst_8 {dimension_numbers = #tpu.dot_dimension_numbers<[1], [0], [0], [1], [0, 0, 1, 1], [], []>} : vector<128x32xf32>, vector<32x16xf32>, vector<128x16xf32> -> vector<128x16xf32>
    %c0_9 = arith.constant 0 : index
    %c0_10 = arith.constant 0 : index
    %10 = vector.load %arg5[%c0_9, %c0_10] : memref<1x16xf32, #tpu.memory_space<vmem>>, vector<1x16xf32>
    %11 = vector.broadcast %10 : vector<1x16xf32> to vector<128x16xf32>
    %12 = arith.addf %9, %11 : vector<128x16xf32>
    %cst_11 = arith.constant 0.000000e+00 : f32
    %13 = vector.broadcast %cst_11 : f32 to vector<128x16xf32>
    %14 = arith.maximumf %12, %13 : vector<128x16xf32>
    %c0_12 = arith.constant 0 : index
    %c0_13 = arith.constant 0 : index
    %15 = vector.load %arg6[%c0_12, %c0_13] : memref<16x4xf32, #tpu.memory_space<vmem>>, vector<16x4xf32>
    %cst_14 = arith.constant dense<0.000000e+00> : vector<128x4xf32>
    %16 = tpu.matmul %14, %15, %cst_14 {dimension_numbers = #tpu.dot_dimension_numbers<[1], [0], [0], [1], [0, 0, 1, 1], [], []>} : vector<128x16xf32>, vector<16x4xf32>, vector<128x4xf32> -> vector<128x4xf32>
    %c0_15 = arith.constant 0 : index
    %c0_16 = arith.constant 0 : index
    %17 = vector.load %arg7[%c0_15, %c0_16] : memref<1x4xf32, #tpu.memory_space<vmem>>, vector<1x4xf32>
    %18 = vector.broadcast %17 : vector<1x4xf32> to vector<128x4xf32>
    %19 = arith.addf %16, %18 : vector<128x4xf32>
    %c0_17 = arith.constant 0 : index
    %c0_18 = arith.constant 0 : index
    %20 = vector.load %arg8[%c0_17, %c0_18] : memref<128x4xf32, #tpu.memory_space<vmem>>, vector<128x4xf32>
    tpu.vector_store %arg8[%c0_17, %c0_18], %19 {strides = array<i32>} : memref<128x4xf32, #tpu.memory_space<vmem>>, vector<128x4xf32>,
    return
  }
  func.func @transform_0(%arg0: i32) -> (i32, i32) {
    %c0_i32 = arith.constant 0 : i32
    %c0_i32_0 = arith.constant 0 : i32
    return %arg0, %c0_i32 : i32, i32
  }
  func.func @transform_1(%arg0: i32) -> (i32, i32) {
    %c0_i32 = arith.constant 0 : i32
    %c0_i32_0 = arith.constant 0 : i32
    %c0_i32_1 = arith.constant 0 : i32
    return %c0_i32, %c0_i32_0 : i32, i32
  }
  func.func @transform_2(%arg0: i32) -> (i32, i32) {
    %c0_i32 = arith.constant 0 : i32
    %c0_i32_0 = arith.constant 0 : i32
    %c0_i32_1 = arith.constant 0 : i32
    return %c0_i32, %c0_i32_0 : i32, i32
  }
  func.func @transform_3(%arg0: i32) -> (i32, i32) {
    %c0_i32 = arith.constant 0 : i32
    %c0_i32_0 = arith.constant 0 : i32
    %c0_i32_1 = arith.constant 0 : i32
    return %c0_i32, %c0_i32_0 : i32, i32
  }
  func.func @transform_4(%arg0: i32) -> (i32, i32) {
    %c0_i32 = arith.constant 0 : i32
    %c0_i32_0 = arith.constant 0 : i32
    %c0_i32_1 = arith.constant 0 : i32
    return %c0_i32, %c0_i32_0 : i32, i32
  }
  func.func @transform_5(%arg0: i32) -> (i32, i32) {
    %c0_i32 = arith.constant 0 : i32
    %c0_i32_0 = arith.constant 0 : i32
    %c0_i32_1 = arith.constant 0 : i32
    return %c0_i32, %c0_i32_0 : i32, i32
  }
  func.func @transform_6(%arg0: i32) -> (i32, i32) {
    %c0_i32 = arith.constant 0 : i32
    %c0_i32_0 = arith.constant 0 : i32
    %c0_i32_1 = arith.constant 0 : i32
    return %c0_i32, %c0_i32_0 : i32, i32
  }
  func.func @transform_7(%arg0: i32) -> (i32, i32) {
    %c0_i32 = arith.constant 0 : i32
    %c0_i32_0 = arith.constant 0 : i32
    return %arg0, %c0_i32 : i32, i32
  }
}

</mosaic_0001>

<llo_original>
// kernel: tpu_custom_call.1
$region0: #{tpu_custom_call.1}
  #allocation0 [shape = 'u32[]', space=smem, size = 0x4, offset = 0x4, fixed_abs, tag = 'smem constant byte address 0x4 - core index']
  #allocation1 [shape = 'u32[144,128]{1,0:T(1,128)}', space=vmem, size = 0x12000, scoped, tag = 'internal scratch']
  %s0 = inlined_call_operand.vmem [shape: f32[256,8], index: 0, kind: input, shape index: {}]
  %s1 = inlined_call_operand.vmem [shape: f32[8,32], index: 1, kind: input, shape index: {}]
  %s2 = inlined_call_operand.vmem [shape: f32[1,32], index: 2, kind: input, shape index: {}]
  %s3 = inlined_call_operand.vmem [shape: f32[32,16], index: 3, kind: input, shape index: {}]
  %s4 = inlined_call_operand.vmem [shape: f32[1,16], index: 4, kind: input, shape index: {}]
  %s5 = inlined_call_operand.vmem [shape: f32[16,4], index: 5, kind: input, shape index: {}]
  %s6 = inlined_call_operand.vmem [shape: f32[1,4], index: 6, kind: input, shape index: {}]
  %s7 = inlined_call_operand.vmem [shape: f32[256,4], index: 7, kind: output, shape index: {}]
  %s8 = sld [smem:[#allocation0]]
  $region61: #{tpu_custom_call.1} parent=0
    _
  %s10 = ssub.s32 1, %s8
  %s11 = scalar_select 0, %s10, %s8
  loop: start=0, step=1, limit=4
  $region2: #{tpu_custom_call.1} parent=0 // loop_pre_header
    _
  $region3: #{tpu_custom_call.1} parent=0 // loop_header
    %s13 = sphi 0, %s17
    %p14 = scmp.ge.s32.totalorder %s13, 4
    %s23 = sphi 0, %s25
    %s26 = sphi 0, %s23
    %s27 = sphi 0, %s26
    %s43 = sphi 0, %s27
    %s47 = sphi 0, %s47
    %s49 = sphi 0, %s47
    %s50 = sphi 0, %s49
    %s64 = sphi 0, %s50
    %s68 = sphi 0, %s68
    %s70 = sphi 0, %s68
    %s71 = sphi 0, %s70
    %s85 = sphi 0, %s71
    %s89 = sphi 0, %s89
    %s91 = sphi 0, %s89
    %s92 = sphi 0, %s91
    %s106 = sphi 0, %s92
    %s110 = sphi 0, %s110
    %s112 = sphi 0, %s110
    %s113 = sphi 0, %s112
    %s127 = sphi 0, %s113
    %s131 = sphi 0, %s131
    %s133 = sphi 0, %s131
    %s134 = sphi 0, %s133
    %s148 = sphi 0, %s134
    %s152 = sphi 0, %s152
    %s154 = sphi 0, %s152
    %s155 = sphi 0, %s154
    %s169 = sphi 0, %s155
    %s175 = sphi 0, %s177
    %s178 = sphi 0, %s175
    %s179 = sphi 0, %s178
    %s195 = sphi 0, %s179
  $region4: #{tpu_custom_call.1} parent=0 // loop_header_branch
    %16 = sbr.rel (%p14) target = $region8
  $region5: #{tpu_custom_call.1} parent=0 // loop_body
    %s18 = ssub.s32 %s13, 1
    %s19 = ssub.s32 %s13, 2
    %s20 = sadd.s32 %s13, 1
    %s21 = ssub.s32 %s13, %s20
    %p22 = scmp.eq.s32.totalorder %s21, 0
    %s24 = sadd.s32 %s23, 1
    %s25 = scalar_select %p22, %s23, %s24
    %p28 = pneg %p22
    %p29 = scmp.eq.s32.totalorder %s13, 1
    %p30 = por %p28, %p29
    %p31 = scmp.ne.s32.totalorder %s23, %s26
    %p32 = scmp.eq.s32.totalorder %s13, 0
    %p33 = por %p31, %p32
    %p34 = scmp.ne.s32.totalorder %s23, %s26
    %p35 = scmp.eq.s32.totalorder %s18, 1
    %p36 = por %p34, %p35
    %p37 = scmp.ne.s32.totalorder %s26, %s27
    %p38 = scmp.eq.s32.totalorder %s18, 0
    %p39 = por %p37, %p38
    %p40 = scmp.ne.s32.totalorder %s26, %s27
    %p41 = scmp.eq.s32.totalorder %s19, 1
    %p42 = por %p40, %p41
    %p44 = scmp.ne.s32.totalorder %s27, %s43
    %p45 = scmp.eq.s32.totalorder %s19, 0
    %p46 = por %p44, %p45
    %s48 = sadd.s32 %s47, 1
    %p51 = scmp.eq.s32.totalorder %s13, 1
    %p52 = scmp.ne.s32.totalorder %s47, %s49
    %p53 = scmp.eq.s32.totalorder %s13, 0
    %p54 = por %p52, %p53
    %p55 = scmp.ne.s32.totalorder %s47, %s49
    %p56 = scmp.eq.s32.totalorder %s18, 1
    %p57 = por %p55, %p56
    %p58 = scmp.ne.s32.totalorder %s49, %s50
    %p59 = scmp.eq.s32.totalorder %s18, 0
    %p60 = por %p58, %p59
    %p61 = scmp.ne.s32.totalorder %s49, %s50
    %p62 = scmp.eq.s32.totalorder %s19, 1
    %p63 = por %p61, %p62
    %p65 = scmp.ne.s32.totalorder %s50, %s64
    %p66 = scmp.eq.s32.totalorder %s19, 0
    %p67 = por %p65, %p66
    %s69 = sadd.s32 %s68, 1
    %p72 = scmp.eq.s32.totalorder %s13, 1
    %p73 = scmp.ne.s32.totalorder %s68, %s70
    %p74 = scmp.eq.s32.totalorder %s13, 0
    %p75 = por %p73, %p74
    %p76 = scmp.ne.s32.totalorder %s68, %s70
    %p77 = scmp.eq.s32.totalorder %s18, 1
    %p78 = por %p76, %p77
    %p79 = scmp.ne.s32.totalorder %s70, %s71
    %p80 = scmp.eq.s32.totalorder %s18, 0
    %p81 = por %p79, %p80
    %p82 = scmp.ne.s32.totalorder %s70, %s71
    %p83 = scmp.eq.s32.totalorder %s19, 1
    %p84 = por %p82, %p83
    %p86 = scmp.ne.s32.totalorder %s71, %s85
    %p87 = scmp.eq.s32.totalorder %s19, 0
    %p88 = por %p86, %p87
    %s90 = sadd.s32 %s89, 1
    %p93 = scmp.eq.s32.totalorder %s13, 1
    %p94 = scmp.ne.s32.totalorder %s89, %s91
    %p95 = scmp.eq.s32.totalorder %s13, 0
    %p96 = por %p94, %p95
    %p97 = scmp.ne.s32.totalorder %s89, %s91
    %p98 = scmp.eq.s32.totalorder %s18, 1
    %p99 = por %p97, %p98
    %p100 = scmp.ne.s32.totalorder %s91, %s92
    %p101 = scmp.eq.s32.totalorder %s18, 0
    %p102 = por %p100, %p101
    %p103 = scmp.ne.s32.totalorder %s91, %s92
    %p104 = scmp.eq.s32.totalorder %s19, 1
    %p105 = por %p103, %p104
    %p107 = scmp.ne.s32.totalorder %s92, %s106
    %p108 = scmp.eq.s32.totalorder %s19, 0
    %p109 = por %p107, %p108
    %s111 = sadd.s32 %s110, 1
    %p114 = scmp.eq.s32.totalorder %s13, 1
    %p115 = scmp.ne.s32.totalorder %s110, %s112
    %p116 = scmp.eq.s32.totalorder %s13, 0
    %p117 = por %p115, %p116
    %p118 = scmp.ne.s32.totalorder %s110, %s112
    %p119 = scmp.eq.s32.totalorder %s18, 1
    %p120 = por %p118, %p119
    %p121 = scmp.ne.s32.totalorder %s112, %s113
    %p122 = scmp.eq.s32.totalorder %s18, 0
    %p123 = por %p121, %p122
    %p124 = scmp.ne.s32.totalorder %s112, %s113
    %p125 = scmp.eq.s32.totalorder %s19, 1
    %p126 = por %p124, %p125
    %p128 = scmp.ne.s32.totalorder %s113, %s127
    %p129 = scmp.eq.s32.totalorder %s19, 0
    %p130 = por %p128, %p129
    %s132 = sadd.s32 %s131, 1
    %p135 = scmp.eq.s32.totalorder %s13, 1
    %p136 = scmp.ne.s32.totalorder %s131, %s133
    %p137 = scmp.eq.s32.totalorder %s13, 0
    %p138 = por %p136, %p137
    %p139 = scmp.ne.s32.totalorder %s131, %s133
    %p140 = scmp.eq.s32.totalorder %s18, 1
    %p141 = por %p139, %p140
    %p142 = scmp.ne.s32.totalorder %s133, %s134
    %p143 = scmp.eq.s32.totalorder %s18, 0
    %p144 = por %p142, %p143
    %p145 = scmp.ne.s32.totalorder %s133, %s134
    %p146 = scmp.eq.s32.totalorder %s19, 1
    %p147 = por %p145, %p146
    %p149 = scmp.ne.s32.totalorder %s134, %s148
    %p150 = scmp.eq.s32.totalorder %s19, 0
    %p151 = por %p149, %p150
    %s153 = sadd.s32 %s152, 1
    %p156 = scmp.eq.s32.totalorder %s13, 1
    %p157 = scmp.ne.s32.totalorder %s152, %s154
    %p158 = scmp.eq.s32.totalorder %s13, 0
    %p159 = por %p157, %p158
    %p160 = scmp.ne.s32.totalorder %s152, %s154
    %p161 = scmp.eq.s32.totalorder %s18, 1
    %p162 = por %p160, %p161
    %p163 = scmp.ne.s32.totalorder %s154, %s155
    %p164 = scmp.eq.s32.totalorder %s18, 0
    %p165 = por %p163, %p164
    %p166 = scmp.ne.s32.totalorder %s154, %s155
    %p167 = scmp.eq.s32.totalorder %s19, 1
    %p168 = por %p166, %p167
    %p170 = scmp.ne.s32.totalorder %s155, %s169
    %p171 = scmp.eq.s32.totalorder %s19, 0
    %p172 = por %p170, %p171
    %s173 = ssub.s32 %s13, %s20
    %p174 = scmp.eq.s32.totalorder %s173, 0
    %s176 = sadd.s32 %s175, 1
    %s177 = scalar_select %p174, %s175, %s176
    %p180 = pneg %p174
    %p181 = scmp.eq.s32.totalorder %s13, 1
    %p182 = por %p180, %p181
    %p183 = scmp.ne.s32.totalorder %s175, %s178
    %p184 = scmp.eq.s32.totalorder %s13, 0
    %p185 = por %p183, %p184
    %p186 = scmp.ne.s32.totalorder %s175, %s178
    %p187 = scmp.eq.s32.totalorder %s18, 1
    %p188 = por %p186, %p187
    %p189 = scmp.ne.s32.totalorder %s178, %s179
    %p190 = scmp.eq.s32.totalorder %s18, 0
    %p191 = por %p189, %p190
    %p192 = scmp.ne.s32.totalorder %s178, %s179
    %p193 = scmp.eq.s32.totalorder %s19, 1
    %p194 = por %p192, %p193
    %p196 = scmp.ne.s32.totalorder %s179, %s195
    %p197 = scmp.eq.s32.totalorder %s19, 0
    %p198 = por %p196, %p197
    %p199 = scmp.le.s32.totalorder 1, %s13
    %p200 = scmp.lt.s32.totalorder %s13, 3
    %p201 = pnand %p199, %p200
    %p202 = pneg %p201
    // Predicated region
    $region9: #{tpu_custom_call.1} parent=5 // pred_check
      _
    $region10: #{tpu_custom_call.1} parent=5 // pred_check_branch
      %204 = sbr.rel (%p201) target = $region12
    $region11: #{tpu_custom_call.1} parent=5 // pred_region
      %s205 = ssub.s32 %s13, 1
      // Predicated region
      $region13: #{tpu_custom_call.1} parent=11 // pred_check
        %p206 = pneg %p60
      $region14: #{tpu_custom_call.1} parent=11 // pred_check_branch
        %208 = sbr.rel (%p206) target = $region16
      $region15: #{tpu_custom_call.1} parent=11 // pred_region
        _
      $region16: #{tpu_custom_call.1} parent=11 // pred_fallthru
        _
      // Predicated region
      $region17: #{tpu_custom_call.1} parent=11 // pred_check
        %p209 = pneg %p81
      $region18: #{tpu_custom_call.1} parent=11 // pred_check_branch
        %211 = sbr.rel (%p209) target = $region20
      $region19: #{tpu_custom_call.1} parent=11 // pred_region
        _
      $region20: #{tpu_custom_call.1} parent=11 // pred_fallthru
        _
      // Predicated region
      $region21: #{tpu_custom_call.1} parent=11 // pred_check
        %p212 = pneg %p102
      $region22: #{tpu_custom_call.1} parent=11 // pred_check_branch
        %214 = sbr.rel (%p212) target = $region24
      $region23: #{tpu_custom_call.1} parent=11 // pred_region
        _
      $region24: #{tpu_custom_call.1} parent=11 // pred_fallthru
        _
      // Predicated region
      $region25: #{tpu_custom_call.1} parent=11 // pred_check
        %p215 = pneg %p123
      $region26: #{tpu_custom_call.1} parent=11 // pred_check_branch
        %217 = sbr.rel (%p215) target = $region28
      $region27: #{tpu_custom_call.1} parent=11 // pred_region
        _
      $region28: #{tpu_custom_call.1} parent=11 // pred_fallthru
        _
      // Predicated region
      $region29: #{tpu_custom_call.1} parent=11 // pred_check
        %p218 = pneg %p144
      $region30: #{tpu_custom_call.1} parent=11 // pred_check_branch
        %220 = sbr.rel (%p218) target = $region32
      $region31: #{tpu_custom_call.1} parent=11 // pred_region
        _
      $region32: #{tpu_custom_call.1} parent=11 // pred_fallthru
        _
      // Predicated region
      $region33: #{tpu_custom_call.1} parent=11 // pred_check
        %p221 = pneg %p165
      $region34: #{tpu_custom_call.1} parent=11 // pred_check_branch
        %223 = sbr.rel (%p221) target = $region36
      $region35: #{tpu_custom_call.1} parent=11 // pred_region
        _
      $region36: #{tpu_custom_call.1} parent=11 // pred_fallthru
        _
    $region12: #{tpu_custom_call.1} parent=5 // pred_fallthru
      _
    %p224 = scmp.lt.s32.totalorder %s13, 2
    // Predicated region
    $region37: #{tpu_custom_call.1} parent=5 // pred_check
      %p225 = pneg %p224
    $region38: #{tpu_custom_call.1} parent=5 // pred_check_branch
      %227 = sbr.rel (%p225) target = $region40
    $region39: #{tpu_custom_call.1} parent=5 // pred_region
      // Predicated region
      $region41: #{tpu_custom_call.1} parent=39 // pred_check
        %p228 = pneg %p33
      $region42: #{tpu_custom_call.1} parent=39 // pred_check_branch
        %230 = sbr.rel (%p228) target = $region44
      $region43: #{tpu_custom_call.1} parent=39 // pred_region
        %s231 = smul.u32 16, %s13
        %p232 = scmp.lt.s32.totalorder %s231, 31
        %s233 = scalar_select %p232, %s231, 31
        %s234 = smul.addr %s233, 8
        %s235 = scalar_lea.vmem %s0, %s234
        %s236 = smul.u32 16, %s13
      $region44: #{tpu_custom_call.1} parent=39 // pred_fallthru
        _
    $region40: #{tpu_custom_call.1} parent=5 // pred_fallthru
      _
    %p237 = scmp.le.s32.totalorder 1, %s13
    %p238 = scmp.lt.s32.totalorder %s13, 3
    %p239 = pnand %p237, %p238
    %p240 = pneg %p239
    // Predicated region
    $region45: #{tpu_custom_call.1} parent=5 // pred_check
      _
    $region46: #{tpu_custom_call.1} parent=5 // pred_check_branch
      %242 = sbr.rel (%p239) target = $region48
    $region47: #{tpu_custom_call.1} parent=5 // pred_region
      %s243 = ssub.s32 %s13, 1
      %s244 = smul.u32 16, %s18
      %p245 = scmp.lt.s32.totalorder %s244, 31
      %s246 = scalar_select %p245, %s244, 31
      %s247 = smul.addr %s246, 8
      %s248 = scalar_lea.vmem %s0, %s247
      %p249 = pneg %p39
      %p250 = pneg %p36
      %p251 = pneg %p60
      %p252 = pneg %p57
      %p253 = pneg %p81
      %p254 = pneg %p78
      %p255 = pneg %p102
      %p256 = pneg %p99
      %p257 = pneg %p123
      %p258 = pneg %p120
      %p259 = pneg %p144
      %p260 = pneg %p141
      %p261 = pneg %p165
      %p262 = pneg %p162
      %p263 = pneg %p191
      %p264 = pneg %p188
      %s265 = smul.u32 16, %s18
      %p266 = scmp.lt.s32.totalorder %s265, 31
      %s267 = scalar_select %p266, %s265, 31
      %s268 = smul.addr %s267, 8
      %s269 = scalar_lea.vmem %s7, %s268
      %s270 = smul.u32 16, %s18
      %p271 = scmp.lt.s32.totalorder %s270, 31
      %s272 = scalar_select %p271, %s270, 31
      %s273 = smul.addr %s272, 8
      %s274 = scalar_lea.vmem %s0, %s273
      %s275 = smul.u32 16, %s18
      %s276 = smul.u32 16, %s18
      %p277 = scmp.lt.s32.totalorder %s276, 31
      %s278 = scalar_select %p277, %s276, 31
      %s279 = smul.addr %s278, 8
      %s280 = scalar_lea.vmem %s7, %s279
      %s281 = smul.u32 16, %s18
      %v282 = vld [vmem:[%s274] sm:$0xff]
      %v283 = vld [vmem:[%s274 + $0x8] sm:$0xff]
      %v284 = vld [vmem:[%s274 + $0x10] sm:$0xff]
      %v285 = vld [vmem:[%s274 + $0x18] sm:$0xff]
      %v286 = vld [vmem:[%s274 + $0x20] sm:$0xff]
      %v287 = vld [vmem:[%s274 + $0x28] sm:$0xff]
      %v288 = vld [vmem:[%s274 + $0x30] sm:$0xff]
      %v289 = vld [vmem:[%s274 + $0x38] sm:$0xff]
      %v290 = vld [vmem:[%s274 + $0x40] sm:$0xff]
      %v291 = vld [vmem:[%s274 + $0x48] sm:$0xff]
      %v292 = vld [vmem:[%s274 + $0x50] sm:$0xff]
      %v293 = vld [vmem:[%s274 + $0x58] sm:$0xff]
      %v294 = vld [vmem:[%s274 + $0x60] sm:$0xff]
      %v295 = vld [vmem:[%s274 + $0x68] sm:$0xff]
      %v296 = vld [vmem:[%s274 + $0x70] sm:$0xff]
      %v297 = vld [vmem:[%s274 + $0x78] sm:$0xff]
      %v298 = vld [vmem:[%s1] sm:$0xff]
      %v299 = vld [vmem:[%s2] sm:$0x1]
      %v301 = vlaneseq
      %v302 = vshrl.u32 %v301, 7
      %v303 = vsub.s32 0, %v302
      %v304 = vrot.slane %v299, %v303
      %vm306 = vcmask 64512
      %v308 = vsel %vm306, %v282, 0
      %v311 = vsel %vm306, %v283, 0
      %v314 = vsel %vm306, %v284, 0
      %v317 = vsel %vm306, %v285, 0
      %v320 = vsel %vm306, %v286, 0
      %v323 = vsel %vm306, %v287, 0
      %v326 = vsel %vm306, %v288, 0
      %v329 = vsel %vm306, %v289, 0
      %v332 = vsel %vm306, %v290, 0
      %v335 = vsel %vm306, %v291, 0
      %v338 = vsel %vm306, %v292, 0
      %v341 = vsel %vm306, %v293, 0
      %v344 = vsel %vm306, %v294, 0
      %v347 = vsel %vm306, %v295, 0
      %v350 = vsel %vm306, %v296, 0
      %v353 = vsel %vm306, %v297, 0
      %355 = vmatprep.subr.mxu0 0.0
      %356 = vmatpush1.msra.mxu0 0.0
      %357 = vmatprep.subr.mxu0 0.0
      %358 = vmatpush1.msra.mxu0 0.0
      %359 = vmatprep.subr.mxu0 0.0
      %360 = vmatpush1.msra.mxu0 0.0
      %361 = vmatprep.subr.mxu0 0.0
      %362 = vmatpush1.msra.mxu0 0.0
      %363 = vmatprep.subr.mxu0 0.0
      %364 = vmatpush1.msra.mxu0 0.0
      %365 = vmatprep.subr.mxu0 0.0
      %366 = vmatpush1.msra.mxu0 0.0
      %367 = vmatprep.subr.mxu0 0.0
      %368 = vmatpush1.msra.mxu0 0.0
      %369 = vmatprep.subr.mxu0 0.0
      %370 = vmatpush1.msra.mxu0 0.0
      %371 = vmatprep.subr.mxu0 0.0
      %372 = vmatpush1.msra.mxu0 0.0
      %373 = vmatprep.subr.mxu0 0.0
      %374 = vmatpush1.msra.mxu0 0.0
      %375 = vmatprep.subr.mxu0 0.0
      %376 = vmatpush1.msra.mxu0 0.0
      %377 = vmatprep.subr.mxu0 0.0
      %378 = vmatpush1.msra.mxu0 0.0
      %379 = vmatprep.subr.mxu0 0.0
      %380 = vmatpush1.msra.mxu0 0.0
      %381 = vmatprep.subr.mxu0 0.0
      %382 = vmatpush1.msra.mxu0 0.0
      %383 = vmatprep.subr.mxu0 0.0
      %384 = vmatpush1.msra.mxu0 0.0
      %385 = vmatprep.subr.mxu0 0.0
      %386 = vmatpush1.msra.mxu0 %v298
      %387 = vmatprep.subr.mxu0 0.0
      %388 = vmatpush2.msra.mxu0 0.0
      %389 = vmatprep.subr.mxu0 0.0
      %390 = vmatpush2.msra.mxu0 0.0
      %391 = vmatprep.subr.mxu0 0.0
      %392 = vmatpush2.msra.mxu0 0.0
      %393 = vmatprep.subr.mxu0 0.0
      %394 = vmatpush2.msra.mxu0 0.0
      %395 = vmatprep.subr.mxu0 0.0
      %396 = vmatpush2.msra.mxu0 0.0
      %397 = vmatprep.subr.mxu0 0.0
      %398 = vmatpush2.msra.mxu0 0.0
      %399 = vmatprep.subr.mxu0 0.0
      %400 = vmatpush2.msra.mxu0 0.0
      %401 = vmatprep.subr.mxu0 0.0
      %402 = vmatpush2.msra.mxu0 0.0
      %403 = vmatprep.subr.mxu0 0.0
      %404 = vmatpush2.msra.mxu0 0.0
      %405 = vmatprep.subr.mxu0 0.0
      %406 = vmatpush2.msra.mxu0 0.0
      %407 = vmatprep.subr.mxu0 0.0
      %408 = vmatpush2.msra.mxu0 0.0
      %409 = vmatprep.subr.mxu0 0.0
      %410 = vmatpush2.msra.mxu0 0.0
      %411 = vmatprep.subr.mxu0 0.0
      %412 = vmatpush2.msra.mxu0 0.0
      %413 = vmatprep.subr.mxu0 0.0
      %414 = vmatpush2.msra.mxu0 0.0
      %415 = vmatprep.subr.mxu0 0.0
      %416 = vmatpush2.msra.mxu0 0.0
      %417 = vmatprep.subr.mxu0 0.0
      %418 = vmatpush2.msra.mxu0 0.0
      %419 = vmatprep.mubr.f32.mxu0 0.0
      %420 = vmatmul.mubr.f32.gmra.mxu0 %v308
      %v421 = vpop.f32.mrf.mxu0
      %v422 = vadd.f32 %v304, %v421
      %v423 = vpop.f32.mrf.mxu0
      %424 = vmatprep.mubr.f32.mxu0 0.0
      %425 = vmatmul.mubr.f32.gmra.mxu0 %v311
      %v426 = vpop.f32.mrf.mxu0
      %v427 = vadd.f32 %v304, %v426
      %v428 = vpop.f32.mrf.mxu0
      %429 = vmatprep.mubr.f32.mxu0 0.0
      %430 = vmatmul.mubr.f32.gmra.mxu0 %v314
      %v431 = vpop.f32.mrf.mxu0
      %v432 = vadd.f32 %v304, %v431
      %v433 = vpop.f32.mrf.mxu0
      %434 = vmatprep.mubr.f32.mxu0 0.0
      %435 = vmatmul.mubr.f32.gmra.mxu0 %v317
      %v436 = vpop.f32.mrf.mxu0
      %v437 = vadd.f32 %v304, %v436
      %v438 = vpop.f32.mrf.mxu0
      %439 = vmatprep.mubr.f32.mxu0 0.0
      %440 = vmatmul.mubr.f32.gmra.mxu0 %v320
      %v441 = vpop.f32.mrf.mxu0
      %v442 = vadd.f32 %v304, %v441
      %v443 = vpop.f32.mrf.mxu0
      %444 = vmatprep.mubr.f32.mxu0 0.0
      %445 = vmatmul.mubr.f32.gmra.mxu0 %v323
      %v446 = vpop.f32.mrf.mxu0
      %v447 = vadd.f32 %v304, %v446
      %v448 = vpop.f32.mrf.mxu0
      %449 = vmatprep.mubr.f32.mxu0 0.0
      %450 = vmatmul.mubr.f32.gmra.mxu0 %v326
      %v451 = vpop.f32.mrf.mxu0
      %v452 = vadd.f32 %v304, %v451
      %v453 = vpop.f32.mrf.mxu0
      %454 = vmatprep.mubr.f32.mxu0 0.0
      %455 = vmatmul.mubr.f32.gmra.mxu0 %v329
      %v456 = vpop.f32.mrf.mxu0
      %v457 = vadd.f32 %v304, %v456
      %v458 = vpop.f32.mrf.mxu0
      %459 = vmatprep.mubr.f32.mxu0 0.0
      %460 = vmatmul.mubr.f32.gmra.mxu0 %v332
      %v461 = vpop.f32.mrf.mxu0
      %v462 = vadd.f32 %v304, %v461
      %v463 = vpop.f32.mrf.mxu0
      %464 = vmatprep.mubr.f32.mxu0 0.0
      %465 = vmatmul.mubr.f32.gmra.mxu0 %v335
      %v466 = vpop.f32.mrf.mxu0
      %v467 = vadd.f32 %v304, %v466
      %v468 = vpop.f32.mrf.mxu0
      %469 = vmatprep.mubr.f32.mxu0 0.0
      %470 = vmatmul.mubr.f32.gmra.mxu0 %v338
      %v471 = vpop.f32.mrf.mxu0
      %v472 = vadd.f32 %v304, %v471
      %v473 = vpop.f32.mrf.mxu0
      %474 = vmatprep.mubr.f32.mxu0 0.0
      %475 = vmatmul.mubr.f32.gmra.mxu0 %v341
      %v476 = vpop.f32.mrf.mxu0
      %v477 = vadd.f32 %v304, %v476
      %v478 = vpop.f32.mrf.mxu0
      %479 = vmatprep.mubr.f32.mxu0 0.0
      %480 = vmatmul.mubr.f32.gmra.mxu0 %v344
      %v481 = vpop.f32.mrf.mxu0
      %v482 = vadd.f32 %v304, %v481
      %v483 = vpop.f32.mrf.mxu0
      %484 = vmatprep.mubr.f32.mxu0 0.0
      %485 = vmatmul.mubr.f32.gmra.mxu0 %v347
      %v486 = vpop.f32.mrf.mxu0
      %v487 = vadd.f32 %v304, %v486
      %v488 = vpop.f32.mrf.mxu0
      %489 = vmatprep.mubr.f32.mxu0 0.0
      %490 = vmatmul.mubr.f32.gmra.mxu0 %v350
      %v491 = vpop.f32.mrf.mxu0
      %v492 = vadd.f32 %v304, %v491
      %v493 = vpop.f32.mrf.mxu0
      %494 = vmatprep.mubr.f32.mxu0 0.0
      %495 = vmatmul.mubr.f32.gmra.mxu0 %v353
      %v496 = vpop.f32.mrf.mxu0
      %v497 = vadd.f32 %v304, %v496
      %v498 = vpop.f32.mrf.mxu0
      %499 = vdwg.mxu0
      %v500 = vmax.f32 %v422, 0.0
      %v501 = vmax.f32 %v427, 0.0
      %v502 = vmax.f32 %v432, 0.0
      %v503 = vmax.f32 %v437, 0.0
      %v504 = vmax.f32 %v442, 0.0
      %v505 = vmax.f32 %v447, 0.0
      %v506 = vmax.f32 %v452, 0.0
      %v507 = vmax.f32 %v457, 0.0
      %v508 = vmax.f32 %v462, 0.0
      %v509 = vmax.f32 %v467, 0.0
      %v510 = vmax.f32 %v472, 0.0
      %v511 = vmax.f32 %v477, 0.0
      %v512 = vmax.f32 %v482, 0.0
      %v513 = vmax.f32 %v487, 0.0
      %v514 = vmax.f32 %v492, 0.0
      %v515 = vmax.f32 %v497, 0.0
      %v516 = vld [vmem:[%s3] sm:$0xff]
      %v517 = vld [vmem:[%s3 + $0x8] sm:$0xff]
      %v518 = vld [vmem:[%s3 + $0x10] sm:$0xff]
      %v519 = vld [vmem:[%s3 + $0x18] sm:$0xff]
      %v520 = vld [vmem:[%s4] sm:$0x1]
      %v522 = vlaneseq
      %v523 = vshrl.u32 %v522, 7
      %v524 = vsub.s32 0, %v523
      %v525 = vrot.slane %v520, %v524
      %vm527 = vcmask 261120
      %v529 = vsel %vm527, %v500, 0
      %v532 = vsel %vm527, %v501, 0
      %v535 = vsel %vm527, %v502, 0
      %v538 = vsel %vm527, %v503, 0
      %v541 = vsel %vm527, %v504, 0
      %v544 = vsel %vm527, %v505, 0
      %v547 = vsel %vm527, %v506, 0
      %v550 = vsel %vm527, %v507, 0
      %v553 = vsel %vm527, %v508, 0
      %v556 = vsel %vm527, %v509, 0
      %v559 = vsel %vm527, %v510, 0
      %v562 = vsel %vm527, %v511, 0
      %v565 = vsel %vm527, %v512, 0
      %v568 = vsel %vm527, %v513, 0
      %v571 = vsel %vm527, %v514, 0
      %v574 = vsel %vm527, %v515, 0
      %576 = vmatprep.subr.mxu0 0.0
      %577 = vmatpush1.msra.mxu0 0.0
      %578 = vmatprep.subr.mxu0 0.0
      %579 = vmatpush1.msra.mxu0 0.0
      %580 = vmatprep.subr.mxu0 0.0
      %581 = vmatpush1.msra.mxu0 0.0
      %582 = vmatprep.subr.mxu0 0.0
      %583 = vmatpush1.msra.mxu0 0.0
      %584 = vmatprep.subr.mxu0 0.0
      %585 = vmatpush1.msra.mxu0 0.0
      %586 = vmatprep.subr.mxu0 0.0
      %587 = vmatpush1.msra.mxu0 0.0
      %588 = vmatprep.subr.mxu0 0.0
      %589 = vmatpush1.msra.mxu0 0.0
      %590 = vmatprep.subr.mxu0 0.0
      %591 = vmatpush1.msra.mxu0 0.0
      %592 = vmatprep.subr.mxu0 0.0
      %593 = vmatpush1.msra.mxu0 0.0
      %594 = vmatprep.subr.mxu0 0.0
      %595 = vmatpush1.msra.mxu0 0.0
      %596 = vmatprep.subr.mxu0 0.0
      %597 = vmatpush1.msra.mxu0 0.0
      %598 = vmatprep.subr.mxu0 0.0
      %599 = vmatpush1.msra.mxu0 0.0
      %600 = vmatprep.subr.mxu0 0.0
      %601 = vmatpush1.msra.mxu0 %v519
      %602 = vmatprep.subr.mxu0 0.0
      %603 = vmatpush1.msra.mxu0 %v518
      %604 = vmatprep.subr.mxu0 0.0
      %605 = vmatpush1.msra.mxu0 %v517
      %606 = vmatprep.subr.mxu0 0.0
      %607 = vmatpush1.msra.mxu0 %v516
      %608 = vmatprep.subr.mxu0 0.0
      %609 = vmatpush2.msra.mxu0 0.0
      %610 = vmatprep.subr.mxu0 0.0
      %611 = vmatpush2.msra.mxu0 0.0
      %612 = vmatprep.subr.mxu0 0.0
      %613 = vmatpush2.msra.mxu0 0.0
      %614 = vmatprep.subr.mxu0 0.0
      %615 = vmatpush2.msra.mxu0 0.0
      %616 = vmatprep.subr.mxu0 0.0
      %617 = vmatpush2.msra.mxu0 0.0
      %618 = vmatprep.subr.mxu0 0.0
      %619 = vmatpush2.msra.mxu0 0.0
      %620 = vmatprep.subr.mxu0 0.0
      %621 = vmatpush2.msra.mxu0 0.0
      %622 = vmatprep.subr.mxu0 0.0
      %623 = vmatpush2.msra.mxu0 0.0
      %624 = vmatprep.subr.mxu0 0.0
      %625 = vmatpush2.msra.mxu0 0.0
      %626 = vmatprep.subr.mxu0 0.0
      %627 = vmatpush2.msra.mxu0 0.0
      %628 = vmatprep.subr.mxu0 0.0
      %629 = vmatpush2.msra.mxu0 0.0
      %630 = vmatprep.subr.mxu0 0.0
      %631 = vmatpush2.msra.mxu0 0.0
      %632 = vmatprep.subr.mxu0 0.0
      %633 = vmatpush2.msra.mxu0 0.0
      %634 = vmatprep.subr.mxu0 0.0
      %635 = vmatpush2.msra.mxu0 0.0
      %636 = vmatprep.subr.mxu0 0.0
      %637 = vmatpush2.msra.mxu0 0.0
      %638 = vmatprep.subr.mxu0 0.0
      %639 = vmatpush2.msra.mxu0 0.0
      %640 = vmatprep.mubr.f32.mxu0 0.0
      %641 = vmatmul.mubr.f32.gmra.mxu0 %v529
      %v642 = vpop.f32.mrf.mxu0
      %v643 = vadd.f32 %v525, %v642
      %v644 = vpop.f32.mrf.mxu0
      %645 = vmatprep.mubr.f32.mxu0 0.0
      %646 = vmatmul.mubr.f32.gmra.mxu0 %v532
      %v647 = vpop.f32.mrf.mxu0
      %v648 = vadd.f32 %v525, %v647
      %v649 = vpop.f32.mrf.mxu0
      %650 = vmatprep.mubr.f32.mxu0 0.0
      %651 = vmatmul.mubr.f32.gmra.mxu0 %v535
      %v652 = vpop.f32.mrf.mxu0
      %v653 = vadd.f32 %v525, %v652
      %v654 = vpop.f32.mrf.mxu0
      %655 = vmatprep.mubr.f32.mxu0 0.0
      %656 = vmatmul.mubr.f32.gmra.mxu0 %v538
      %v657 = vpop.f32.mrf.mxu0
      %v658 = vadd.f32 %v525, %v657
      %v659 = vpop.f32.mrf.mxu0
      %660 = vmatprep.mubr.f32.mxu0 0.0
      %661 = vmatmul.mubr.f32.gmra.mxu0 %v541
      %v662 = vpop.f32.mrf.mxu0
      %v663 = vadd.f32 %v525, %v662
      %v664 = vpop.f32.mrf.mxu0
      %665 = vmatprep.mubr.f32.mxu0 0.0
      %666 = vmatmul.mubr.f32.gmra.mxu0 %v544
      %v667 = vpop.f32.mrf.mxu0
      %v668 = vadd.f32 %v525, %v667
      %v669 = vpop.f32.mrf.mxu0
      %670 = vmatprep.mubr.f32.mxu0 0.0
      %671 = vmatmul.mubr.f32.gmra.mxu0 %v547
      %v672 = vpop.f32.mrf.mxu0
      %v673 = vadd.f32 %v525, %v672
      %v674 = vpop.f32.mrf.mxu0
      %675 = vmatprep.mubr.f32.mxu0 0.0
      %676 = vmatmul.mubr.f32.gmra.mxu0 %v550
      %v677 = vpop.f32.mrf.mxu0
      %v678 = vadd.f32 %v525, %v677
      %v679 = vpop.f32.mrf.mxu0
      %680 = vmatprep.mubr.f32.mxu0 0.0
      %681 = vmatmul.mubr.f32.gmra.mxu0 %v553
      %v682 = vpop.f32.mrf.mxu0
      %v683 = vadd.f32 %v525, %v682
      %v684 = vpop.f32.mrf.mxu0
      %685 = vmatprep.mubr.f32.mxu0 0.0
      %686 = vmatmul.mubr.f32.gmra.mxu0 %v556
      %v687 = vpop.f32.mrf.mxu0
      %v688 = vadd.f32 %v525, %v687
      %v689 = vpop.f32.mrf.mxu0
      %690 = vmatprep.mubr.f32.mxu0 0.0
      %691 = vmatmul.mubr.f32.gmra.mxu0 %v559
      %v692 = vpop.f32.mrf.mxu0
      %v693 = vadd.f32 %v525, %v692
      %v694 = vpop.f32.mrf.mxu0
      %695 = vmatprep.mubr.f32.mxu0 0.0
      %696 = vmatmul.mubr.f32.gmra.mxu0 %v562
      %v697 = vpop.f32.mrf.mxu0
      %v698 = vadd.f32 %v525, %v697
      %v699 = vpop.f32.mrf.mxu0
      %700 = vmatprep.mubr.f32.mxu0 0.0
      %701 = vmatmul.mubr.f32.gmra.mxu0 %v565
      %v702 = vpop.f32.mrf.mxu0
      %v703 = vadd.f32 %v525, %v702
      %v704 = vpop.f32.mrf.mxu0
      %705 = vmatprep.mubr.f32.mxu0 0.0
      %706 = vmatmul.mubr.f32.gmra.mxu0 %v568
      %v707 = vpop.f32.mrf.mxu0
      %v708 = vadd.f32 %v525, %v707
      %v709 = vpop.f32.mrf.mxu0
      %710 = vmatprep.mubr.f32.mxu0 0.0
      %711 = vmatmul.mubr.f32.gmra.mxu0 %v571
      %v712 = vpop.f32.mrf.mxu0
      %v713 = vadd.f32 %v525, %v712
      %v714 = vpop.f32.mrf.mxu0
      %715 = vmatprep.mubr.f32.mxu0 0.0
      %716 = vmatmul.mubr.f32.gmra.mxu0 %v574
      %v717 = vpop.f32.mrf.mxu0
      %v718 = vadd.f32 %v525, %v717
      %v719 = vpop.f32.mrf.mxu0
      %720 = vdwg.mxu0
      %v721 = vmax.f32 %v643, 0.0
      %v722 = vmax.f32 %v648, 0.0
      %v723 = vmax.f32 %v653, 0.0
      %v724 = vmax.f32 %v658, 0.0
      %v725 = vmax.f32 %v663, 0.0
      %v726 = vmax.f32 %v668, 0.0
      %v727 = vmax.f32 %v673, 0.0
      %v728 = vmax.f32 %v678, 0.0
      %v729 = vmax.f32 %v683, 0.0
      %v730 = vmax.f32 %v688, 0.0
      %v731 = vmax.f32 %v693, 0.0
      %v732 = vmax.f32 %v698, 0.0
      %v733 = vmax.f32 %v703, 0.0
      %v734 = vmax.f32 %v708, 0.0
      %v735 = vmax.f32 %v713, 0.0
      %v736 = vmax.f32 %v718, 0.0
      %v737 = vld [vmem:[%s5] sm:$0xff]
      %v738 = vld [vmem:[%s5 + $0x8] sm:$0xff]
      %v739 = vld [vmem:[%s6] sm:$0x1]
      %v741 = vlaneseq
      %v742 = vshrl.u32 %v741, 7
      %v743 = vsub.s32 0, %v742
      %v744 = vrot.slane %v739, %v743
      %vm746 = vcmask 130048
      %v748 = vsel %vm746, %v721, 0
      %v751 = vsel %vm746, %v722, 0
      %v754 = vsel %vm746, %v723, 0
      %v757 = vsel %vm746, %v724, 0
      %v760 = vsel %vm746, %v725, 0
      %v763 = vsel %vm746, %v726, 0
      %v766 = vsel %vm746, %v727, 0
      %v769 = vsel %vm746, %v728, 0
      %v772 = vsel %vm746, %v729, 0
      %v775 = vsel %vm746, %v730, 0
      %v778 = vsel %vm746, %v731, 0
      %v781 = vsel %vm746, %v732, 0
      %v784 = vsel %vm746, %v733, 0
      %v787 = vsel %vm746, %v734, 0
      %v790 = vsel %vm746, %v735, 0
      %v793 = vsel %vm746, %v736, 0
      %795 = vmatprep.subr.mxu0 0.0
      %796 = vmatpush1.msra.mxu0 0.0
      %797 = vmatprep.subr.mxu0 0.0
      %798 = vmatpush1.msra.mxu0 0.0
      %799 = vmatprep.subr.mxu0 0.0
      %800 = vmatpush1.msra.mxu0 0.0
      %801 = vmatprep.subr.mxu0 0.0
      %802 = vmatpush1.msra.mxu0 0.0
      %803 = vmatprep.subr.mxu0 0.0
      %804 = vmatpush1.msra.mxu0 0.0
      %805 = vmatprep.subr.mxu0 0.0
      %806 = vmatpush1.msra.mxu0 0.0
      %807 = vmatprep.subr.mxu0 0.0
      %808 = vmatpush1.msra.mxu0 0.0
      %809 = vmatprep.subr.mxu0 0.0
      %810 = vmatpush1.msra.mxu0 0.0
      %811 = vmatprep.subr.mxu0 0.0
      %812 = vmatpush1.msra.mxu0 0.0
      %813 = vmatprep.subr.mxu0 0.0
      %814 = vmatpush1.msra.mxu0 0.0
      %815 = vmatprep.subr.mxu0 0.0
      %816 = vmatpush1.msra.mxu0 0.0
      %817 = vmatprep.subr.mxu0 0.0
      %818 = vmatpush1.msra.mxu0 0.0
      %819 = vmatprep.subr.mxu0 0.0
      %820 = vmatpush1.msra.mxu0 0.0
      %821 = vmatprep.subr.mxu0 0.0
      %822 = vmatpush1.msra.mxu0 0.0
      %823 = vmatprep.subr.mxu0 0.0
      %824 = vmatpush1.msra.mxu0 %v738
      %825 = vmatprep.subr.mxu0 0.0
      %826 = vmatpush1.msra.mxu0 %v737
      %827 = vmatprep.subr.mxu0 0.0
      %828 = vmatpush2.msra.mxu0 0.0
      %829 = vmatprep.subr.mxu0 0.0
      %830 = vmatpush2.msra.mxu0 0.0
      %831 = vmatprep.subr.mxu0 0.0
      %832 = vmatpush2.msra.mxu0 0.0
      %833 = vmatprep.subr.mxu0 0.0
      %834 = vmatpush2.msra.mxu0 0.0
      %835 = vmatprep.subr.mxu0 0.0
      %836 = vmatpush2.msra.mxu0 0.0
      %837 = vmatprep.subr.mxu0 0.0
      %838 = vmatpush2.msra.mxu0 0.0
      %839 = vmatprep.subr.mxu0 0.0
      %840 = vmatpush2.msra.mxu0 0.0
      %841 = vmatprep.subr.mxu0 0.0
      %842 = vmatpush2.msra.mxu0 0.0
      %843 = vmatprep.subr.mxu0 0.0
      %844 = vmatpush2.msra.mxu0 0.0
      %845 = vmatprep.subr.mxu0 0.0
      %846 = vmatpush2.msra.mxu0 0.0
      %847 = vmatprep.subr.mxu0 0.0
      %848 = vmatpush2.msra.mxu0 0.0
      %849 = vmatprep.subr.mxu0 0.0
      %850 = vmatpush2.msra.mxu0 0.0
      %851 = vmatprep.subr.mxu0 0.0
      %852 = vmatpush2.msra.mxu0 0.0
      %853 = vmatprep.subr.mxu0 0.0
      %854 = vmatpush2.msra.mxu0 0.0
      %855 = vmatprep.subr.mxu0 0.0
      %856 = vmatpush2.msra.mxu0 0.0
      %857 = vmatprep.subr.mxu0 0.0
      %858 = vmatpush2.msra.mxu0 0.0
      %859 = vmatprep.mubr.f32.mxu0 0.0
      %860 = vmatmul.mubr.f32.gmra.mxu0 %v748
      %v861 = vpop.f32.mrf.mxu0
      %v862 = vadd.f32 %v744, %v861
      %v863 = vpop.f32.mrf.mxu0
      %864 = vmatprep.mubr.f32.mxu0 0.0
      %865 = vmatmul.mubr.f32.gmra.mxu0 %v751
      %v866 = vpop.f32.mrf.mxu0
      %v867 = vadd.f32 %v744, %v866
      %v868 = vpop.f32.mrf.mxu0
      %869 = vmatprep.mubr.f32.mxu0 0.0
      %870 = vmatmul.mubr.f32.gmra.mxu0 %v754
      %v871 = vpop.f32.mrf.mxu0
      %v872 = vadd.f32 %v744, %v871
      %v873 = vpop.f32.mrf.mxu0
      %874 = vmatprep.mubr.f32.mxu0 0.0
      %875 = vmatmul.mubr.f32.gmra.mxu0 %v757
      %v876 = vpop.f32.mrf.mxu0
      %v877 = vadd.f32 %v744, %v876
      %v878 = vpop.f32.mrf.mxu0
      %879 = vmatprep.mubr.f32.mxu0 0.0
      %880 = vmatmul.mubr.f32.gmra.mxu0 %v760
      %v881 = vpop.f32.mrf.mxu0
      %v882 = vadd.f32 %v744, %v881
      %v883 = vpop.f32.mrf.mxu0
      %884 = vmatprep.mubr.f32.mxu0 0.0
      %885 = vmatmul.mubr.f32.gmra.mxu0 %v763
      %v886 = vpop.f32.mrf.mxu0
      %v887 = vadd.f32 %v744, %v886
      %v888 = vpop.f32.mrf.mxu0
      %889 = vmatprep.mubr.f32.mxu0 0.0
      %890 = vmatmul.mubr.f32.gmra.mxu0 %v766
      %v891 = vpop.f32.mrf.mxu0
      %v892 = vadd.f32 %v744, %v891
      %v893 = vpop.f32.mrf.mxu0
      %894 = vmatprep.mubr.f32.mxu0 0.0
      %895 = vmatmul.mubr.f32.gmra.mxu0 %v769
      %v896 = vpop.f32.mrf.mxu0
      %v897 = vadd.f32 %v744, %v896
      %v898 = vpop.f32.mrf.mxu0
      %899 = vmatprep.mubr.f32.mxu0 0.0
      %900 = vmatmul.mubr.f32.gmra.mxu0 %v772
      %v901 = vpop.f32.mrf.mxu0
      %v902 = vadd.f32 %v744, %v901
      %v903 = vpop.f32.mrf.mxu0
      %904 = vmatprep.mubr.f32.mxu0 0.0
      %905 = vmatmul.mubr.f32.gmra.mxu0 %v775
      %v906 = vpop.f32.mrf.mxu0
      %v907 = vadd.f32 %v744, %v906
      %v908 = vpop.f32.mrf.mxu0
      %909 = vmatprep.mubr.f32.mxu0 0.0
      %910 = vmatmul.mubr.f32.gmra.mxu0 %v778
      %v911 = vpop.f32.mrf.mxu0
      %v912 = vadd.f32 %v744, %v911
      %v913 = vpop.f32.mrf.mxu0
      %914 = vmatprep.mubr.f32.mxu0 0.0
      %915 = vmatmul.mubr.f32.gmra.mxu0 %v781
      %v916 = vpop.f32.mrf.mxu0
      %v917 = vadd.f32 %v744, %v916
      %v918 = vpop.f32.mrf.mxu0
      %919 = vmatprep.mubr.f32.mxu0 0.0
      %920 = vmatmul.mubr.f32.gmra.mxu0 %v784
      %v921 = vpop.f32.mrf.mxu0
      %v922 = vadd.f32 %v744, %v921
      %v923 = vpop.f32.mrf.mxu0
      %924 = vmatprep.mubr.f32.mxu0 0.0
      %925 = vmatmul.mubr.f32.gmra.mxu0 %v787
      %v926 = vpop.f32.mrf.mxu0
      %v927 = vadd.f32 %v744, %v926
      %v928 = vpop.f32.mrf.mxu0
      %929 = vmatprep.mubr.f32.mxu0 0.0
      %930 = vmatmul.mubr.f32.gmra.mxu0 %v790
      %v931 = vpop.f32.mrf.mxu0
      %v932 = vadd.f32 %v744, %v931
      %v933 = vpop.f32.mrf.mxu0
      %934 = vmatprep.mubr.f32.mxu0 0.0
      %935 = vmatmul.mubr.f32.gmra.mxu0 %v793
      %v936 = vpop.f32.mrf.mxu0
      %v937 = vadd.f32 %v744, %v936
      %v938 = vpop.f32.mrf.mxu0
      %939 = vdwg.mxu0
      %vm940 = vcmask 31744
      %941 = vst.msk [vmem:[%s280] sm:$0xff] %vm940, %v862
      %942 = vst.msk [vmem:[%s280 + $0x8] sm:$0xff] %vm940, %v867
      %943 = vst.msk [vmem:[%s280 + $0x10] sm:$0xff] %vm940, %v872
      %944 = vst.msk [vmem:[%s280 + $0x18] sm:$0xff] %vm940, %v877
      %945 = vst.msk [vmem:[%s280 + $0x20] sm:$0xff] %vm940, %v882
      %946 = vst.msk [vmem:[%s280 + $0x28] sm:$0xff] %vm940, %v887
      %947 = vst.msk [vmem:[%s280 + $0x30] sm:$0xff] %vm940, %v892
      %948 = vst.msk [vmem:[%s280 + $0x38] sm:$0xff] %vm940, %v897
      %949 = vst.msk [vmem:[%s280 + $0x40] sm:$0xff] %vm940, %v902
      %950 = vst.msk [vmem:[%s280 + $0x48] sm:$0xff] %vm940, %v907
      %951 = vst.msk [vmem:[%s280 + $0x50] sm:$0xff] %vm940, %v912
      %952 = vst.msk [vmem:[%s280 + $0x58] sm:$0xff] %vm940, %v917
      %953 = vst.msk [vmem:[%s280 + $0x60] sm:$0xff] %vm940, %v922
      %954 = vst.msk [vmem:[%s280 + $0x68] sm:$0xff] %vm940, %v927
      %955 = vst.msk [vmem:[%s280 + $0x70] sm:$0xff] %vm940, %v932
      %956 = vst.msk [vmem:[%s280 + $0x78] sm:$0xff] %vm940, %v937
      %s957 = smul.u32 16, %s18
      %p958 = scmp.lt.s32.totalorder %s957, 31
      %s959 = scalar_select %p958, %s957, 31
      %s960 = smul.addr %s959, 8
      %s961 = scalar_lea.vmem %s7, %s960
      // Predicated region
      $region49: #{tpu_custom_call.1} parent=47 // pred_check
        %p962 = pneg %p188
      $region50: #{tpu_custom_call.1} parent=47 // pred_check_branch
        %964 = sbr.rel (%p962) target = $region52
      $region51: #{tpu_custom_call.1} parent=47 // pred_region
        %s965 = smul.u32 16, %s18
      $region52: #{tpu_custom_call.1} parent=47 // pred_fallthru
        _
    $region48: #{tpu_custom_call.1} parent=5 // pred_fallthru
      _
    %p966 = scmp.le.s32.totalorder 2, %s13
    // Predicated region
    $region53: #{tpu_custom_call.1} parent=5 // pred_check
      %p967 = pneg %p966
    $region54: #{tpu_custom_call.1} parent=5 // pred_check_branch
      %969 = sbr.rel (%p967) target = $region56
    $region55: #{tpu_custom_call.1} parent=5 // pred_region
      %s970 = ssub.s32 %s13, 2
      // Predicated region
      $region57: #{tpu_custom_call.1} parent=55 // pred_check
        %p971 = pneg %p194
      $region58: #{tpu_custom_call.1} parent=55 // pred_check_branch
        %973 = sbr.rel (%p971) target = $region60
      $region59: #{tpu_custom_call.1} parent=55 // pred_region
        %s974 = smul.u32 16, %s19
        %p975 = scmp.lt.s32.totalorder %s974, 31
        %s976 = scalar_select %p975, %s974, 31
        %s977 = smul.addr %s976, 8
        %s978 = scalar_lea.vmem %s7, %s977
      $region60: #{tpu_custom_call.1} parent=55 // pred_fallthru
        _
    $region56: #{tpu_custom_call.1} parent=5 // pred_fallthru
      _
  $region6: #{tpu_custom_call.1} parent=0 // loop_footer
    %s17 = sadd.s32 1, %s13
  $region7: #{tpu_custom_call.1} parent=0 // loop_footer_branch
    %12 = sbr.rel target = $region3
  $region8: #{tpu_custom_call.1} parent=0 // loop_exit
    _

</llo_original>
